<compile_context>
chip_gen: v7x
topology: tpu7x:2x2x1
jax: 0.10.0
libtpu: 0.0.40
codegen_flags: <defaults>
</compile_context>

<pallas_src>
import jax
import jax.numpy as jnp
from jax.experimental import pallas as pl
from jax.experimental.pallas import tpu as pltpu


# --------------------------------------------------------------------------
# Kernel (feature-major: batch on the lane axis)
# --------------------------------------------------------------------------
def _ff_kernel(xt_ref, w1_ref, b1_ref, w2_ref, b2_ref, out_ref):
    """xt_ref (6, TB) -> out_ref (1, TB).

    w1_ref: (3, 6)  fc1.weight (PyTorch (out,in) layout, used directly)
    b1_ref: (3, 1)  fc1.bias as a column
    w2_ref: (3, 1)  fc2.weight as a column
    b2_ref: (1, 1)  fc2.bias
    """
    xt = xt_ref[...]                                                   # (6, TB)
    # Layer 1 on the MXU: (3,6) @ (6,TB) -> (3,TB).  Tiny contraction; the
    # kernel is HBM-bound so MXU under-utilization is irrelevant.
    h = jnp.dot(w1_ref[...], xt, preferred_element_type=jnp.float32)   # (3, TB)
    # One bias add + one sigmoid over the whole tile (no per-unit slices).
    h = jax.nn.sigmoid(h + b1_ref[...])                                # (3, TB)
    # Layer 2: broadcast-mul by the (3,1) weight column, reduce the 3 hidden
    # units along sublanes (XLU), add bias.
    out = jnp.sum(h * w2_ref[...], axis=0, keepdims=True) + b2_ref[...]  # (1, TB)
    out_ref[...] = out.astype(out_ref.dtype)


# --------------------------------------------------------------------------
# Wrapper
# --------------------------------------------------------------------------
def action_conditioned_ff(x, w1, b1, w2, b2, *,
                          tile_b=131072,
                          vmem_limit_bytes=48 * 1024 * 1024):
    """Forward pass.  Parameters are in native PyTorch layout.

    x : (B, 6) float32
    w1: (3, 6)  = fc1.weight      b1: (3,) = fc1.bias
    w2: (1, 3)  = fc2.weight      b2: (1,) = fc2.bias
    returns (B, 1) float32

    tile_b defaults to 131072 (multiple of 128); double-buffered x+out tiles
    are ~16 MiB, which fits every generation's VMEM with the raised limit.
    On v6e/v5e (128 MiB VMEM) tile_b may be pushed to ~262144-524288.
    """
    B = x.shape[0]
    assert x.shape[1] == 6, "expected input features = 6"

    # Lane-dense layout: one XLA transpose in front of the kernel.
    x_t = jnp.transpose(x).astype(jnp.float32)         # (6, B)
    w1f = w1.astype(jnp.float32)                       # (3, 6)
    b1c = b1.reshape(3, 1).astype(jnp.float32)         # (3, 1)
    w2c = w2.reshape(3, 1).astype(jnp.float32)         # (3, 1)
    b2c = b2.reshape(1, 1).astype(jnp.float32)         # (1, 1)

    # Batch tile: either the whole batch, or a multiple of 128 (BlockSpec
    # (8,128) divisibility rule on the lane axis).
    if B <= tile_b:
        tb = B
    else:
        tb = (tile_b // 128) * 128
        assert tb >= 128, "tile_b must be >= 128 when B > tile_b"
    grid = (pl.cdiv(B, tb),)

    cost = pl.CostEstimate(flops=42 * B,                # 36 (fc1) + 6 (fc2) per row
                           transcendentals=3 * B,       # 3 sigmoids per row
                           bytes_accessed=28 * B)       # 24 B in + 4 B out per row

    out_row = pl.pallas_call(
        _ff_kernel,
        out_shape=jax.ShapeDtypeStruct((1, B), jnp.float32),
        grid=grid,
        in_specs=[
            pl.BlockSpec((6, tb), lambda i: (0, i)),    # x^T: batch-tiled on lanes
            pl.BlockSpec((3, 6), lambda i: (0, 0)),     # w1: VMEM-resident
            pl.BlockSpec((3, 1), lambda i: (0, 0)),     # b1 column
            pl.BlockSpec((3, 1), lambda i: (0, 0)),     # w2 column
            pl.BlockSpec((1, 1), lambda i: (0, 0)),     # b2
        ],
        out_specs=pl.BlockSpec((1, tb), lambda i: (0, i)),  # lane-dense output row
        compiler_params=pltpu.CompilerParams(
            dimension_semantics=("parallel",),
            vmem_limit_bytes=vmem_limit_bytes,
        ),
        cost_estimate=cost,
    )(x_t, w1f, b1c, w2c, b2c)

    return out_row.reshape(B, 1)


# --------------------------------------------------------------------------
# Deterministic init mimicking nn.Linear defaults (uniform +/- 1/sqrt(fan_in)),
# kept in native PyTorch (out, in) layout.
# --------------------------------------------------------------------------
def init_params(key):
    k1, k2, k3, k4 = jax.random.split(key, 4)
    bound1 = 1.0 / jnp.sqrt(6.0)
    bound2 = 1.0 / jnp.sqrt(3.0)
    w1 = jax.random.uniform(k1, (3, 6), jnp.float32, -bound1, bound1)  # fc1.weight
    b1 = jax.random.uniform(k2, (3,), jnp.float32, -bound1, bound1)    # fc1.bias
    w2 = jax.random.uniform(k3, (1, 3), jnp.float32, -bound2, bound2)  # fc2.weight
    b2 = jax.random.uniform(k4, (1,), jnp.float32, -bound2, bound2)    # fc2.bias
    return w1, b1, w2, b2


if __name__ == "__main__":
    key = jax.random.PRNGKey(0)
    k_params, k_x = jax.random.split(key)
    w1, b1, w2, b2 = init_params(k_params)

    B = 512                                   # small demo batch
    x = jax.random.normal(k_x, (B, 6), jnp.float32)

    # tile_b=128 so the demo exercises the grid pipeline (4 steps).
    out = jax.block_until_ready(
        action_conditioned_ff(x, w1, b1, w2, b2, tile_b=128))

    # Pure-JAX reference (PyTorch semantics: x @ W.T + b).
    hidden_ref = jax.nn.sigmoid(x @ w1.T + b1)
    out_ref = hidden_ref @ w2.T + b2

    assert out.shape == (B, 1)
    assert jnp.allclose(out, out_ref, atol=1e-4, rtol=1e-4)

    print("KERNEL_OK")
</pallas_src>

<mosaic_0001>
module attributes {stable_mosaic.version = 11 : i64} {
  func.func @_ff_kernel(%arg0: i32, %arg1: memref<6x128xf32, #tpu.memory_space<vmem>>, %arg2: memref<3x6xf32, #tpu.memory_space<vmem>>, %arg3: memref<3x1xf32, #tpu.memory_space<vmem>>, %arg4: memref<3x1xf32, #tpu.memory_space<vmem>>, %arg5: memref<1x1xf32, #tpu.memory_space<vmem>>, %arg6: memref<1x128xf32, #tpu.memory_space<vmem>>) attributes {dimension_semantics = [#tpu.dimension_semantics<parallel>], iteration_bounds = array<i64: 4>, scalar_prefetch = 0 : i64, scratch_operands = 0 : i64, tpu.core_type = #tpu.core_type<tc>, window_params = [{transform_indices = @transform_0, window_bounds = array<i64: 6, 128>}, {pipeline_mode = #tpu.pipeline_mode<synchronous>, transform_indices = @transform_1, window_bounds = array<i64: 3, 6>}, {pipeline_mode = #tpu.pipeline_mode<synchronous>, transform_indices = @transform_2, window_bounds = array<i64: 3, 1>}, {pipeline_mode = #tpu.pipeline_mode<synchronous>, transform_indices = @transform_3, window_bounds = array<i64: 3, 1>}, {pipeline_mode = #tpu.pipeline_mode<synchronous>, transform_indices = @transform_4, window_bounds = array<i64: 1, 1>}, {transform_indices = @transform_5, window_bounds = array<i64: 1, 128>}]} {
    %c0 = arith.constant 0 : index
    %c0_0 = arith.constant 0 : index
    %0 = vector.load %arg1[%c0, %c0_0] : memref<6x128xf32, #tpu.memory_space<vmem>>, vector<6x128xf32>
    %c0_1 = arith.constant 0 : index
    %c0_2 = arith.constant 0 : index
    %1 = vector.load %arg2[%c0_1, %c0_2] : memref<3x6xf32, #tpu.memory_space<vmem>>, vector<3x6xf32>
    %cst = arith.constant dense<0.000000e+00> : vector<3x128xf32>
    %2 = tpu.matmul %1, %0, %cst {dimension_numbers = #tpu.dot_dimension_numbers<[1], [0], [0], [1], [0, 0, 1, 1], [], []>} : vector<3x6xf32>, vector<6x128xf32>, vector<3x128xf32> -> vector<3x128xf32>
    %c0_3 = arith.constant 0 : index
    %c0_4 = arith.constant 0 : index
    %3 = vector.load %arg3[%c0_3, %c0_4] : memref<3x1xf32, #tpu.memory_space<vmem>>, vector<3x1xf32>
    %4 = vector.broadcast %3 : vector<3x1xf32> to vector<3x128xf32>
    %5 = arith.addf %2, %4 : vector<3x128xf32>
    %6 = arith.negf %5 : vector<3x128xf32>
    %7 = math.exp %6 : vector<3x128xf32>
    %cst_5 = arith.constant 1.000000e+00 : f32
    %8 = vector.broadcast %cst_5 : f32 to vector<3x128xf32>
    %9 = arith.addf %8, %7 : vector<3x128xf32>
    %10 = arith.divf %8, %9 : vector<3x128xf32>
    %c0_6 = arith.constant 0 : index
    %c0_7 = arith.constant 0 : index
    %11 = vector.load %arg4[%c0_6, %c0_7] : memref<3x1xf32, #tpu.memory_space<vmem>>, vector<3x1xf32>
    %12 = vector.broadcast %11 : vector<3x1xf32> to vector<3x128xf32>
    %13 = arith.mulf %10, %12 : vector<3x128xf32>
    %cst_8 = arith.constant dense<0.000000e+00> : vector<128xf32>
    %14 = vector.multi_reduction <add>, %13, %cst_8 [0] : vector<3x128xf32> to vector<128xf32>
    %15 = vector.shape_cast %14 : vector<128xf32> to vector<1x128xf32>
    %c0_9 = arith.constant 0 : index
    %c0_10 = arith.constant 0 : index
    %16 = vector.load %arg5[%c0_9, %c0_10] : memref<1x1xf32, #tpu.memory_space<vmem>>, vector<1x1xf32>
    %17 = vector.broadcast %16 : vector<1x1xf32> to vector<1x128xf32>
    %18 = arith.addf %15, %17 : vector<1x128xf32>
    %c0_11 = arith.constant 0 : index
    %c0_12 = arith.constant 0 : index
    %19 = vector.load %arg6[%c0_11, %c0_12] : memref<1x128xf32, #tpu.memory_space<vmem>>, vector<1x128xf32>
    tpu.vector_store %arg6[%c0_11, %c0_12], %18 {strides = array<i32>} : memref<1x128xf32, #tpu.memory_space<vmem>>, vector<1x128xf32>,
    return
  }
  func.func @transform_0(%arg0: i32) -> (i32, i32) {
    %c0_i32 = arith.constant 0 : i32
    %c0_i32_0 = arith.constant 0 : i32
    return %c0_i32, %arg0 : i32, i32
  }
  func.func @transform_1(%arg0: i32) -> (i32, i32) {
    %c0_i32 = arith.constant 0 : i32
    %c0_i32_0 = arith.constant 0 : i32
    %c0_i32_1 = arith.constant 0 : i32
    return %c0_i32, %c0_i32_0 : i32, i32
  }
  func.func @transform_2(%arg0: i32) -> (i32, i32) {
    %c0_i32 = arith.constant 0 : i32
    %c0_i32_0 = arith.constant 0 : i32
    %c0_i32_1 = arith.constant 0 : i32
    return %c0_i32, %c0_i32_0 : i32, i32
  }
  func.func @transform_3(%arg0: i32) -> (i32, i32) {
    %c0_i32 = arith.constant 0 : i32
    %c0_i32_0 = arith.constant 0 : i32
    %c0_i32_1 = arith.constant 0 : i32
    return %c0_i32, %c0_i32_0 : i32, i32
  }
  func.func @transform_4(%arg0: i32) -> (i32, i32) {
    %c0_i32 = arith.constant 0 : i32
    %c0_i32_0 = arith.constant 0 : i32
    %c0_i32_1 = arith.constant 0 : i32
    return %c0_i32, %c0_i32_0 : i32, i32
  }
  func.func @transform_5(%arg0: i32) -> (i32, i32) {
    %c0_i32 = arith.constant 0 : i32
    %c0_i32_0 = arith.constant 0 : i32
    return %c0_i32, %arg0 : i32, i32
  }
}

</mosaic_0001>

<llo_original>
// kernel: tpu_custom_call.1
$region0: #{tpu_custom_call.1}
  #allocation0 [shape = 'u32[]', space=smem, size = 0x4, offset = 0x4, fixed_abs, tag = 'smem constant byte address 0x4 - core index']
  #allocation1 [shape = 'u32[144,128]{1,0:T(1,128)}', space=vmem, size = 0x12000, scoped, tag = 'internal scratch']
  #allocation2 [shape = 'f32[1,1]{1,0:T(1,128)S(1)}', space=vmem, size = 0x200, scoped, tag = 'scoped memory for tpu_custom_call.1']
  %s0 = inlined_call_operand.hbm [shape: f32[6,512], index: 0, kind: input, shape index: {}]
  %s1 = inlined_call_operand.vmem [shape: f32[3,6], index: 1, kind: input, shape index: {}]
  %s2 = inlined_call_operand.vmem [shape: f32[3,1], index: 2, kind: input, shape index: {}]
  %s3 = inlined_call_operand.vmem [shape: f32[3,1], index: 3, kind: input, shape index: {}]
  %s4 = inlined_call_operand.<no memory space> [shape: f32[1,1], index: 4, kind: input, shape index: {}]
  %s5 = inlined_call_operand.hbm [shape: f32[1,512], index: 5, kind: output, shape index: {}]
  %s6 = sld [smem:[#allocation0]]
  $region57: #{tpu_custom_call.1} parent=0
    _
  %s8 = ssub.s32 1, %s6
  %s9 = scalar_select 0, %s8, %s6
  %v10 = vstv %s4
  %11 = vst [vmem:[#allocation2] sm:$0x1] %v10
  $region1: #{tpu_custom_call.1} parent=0
    #allocation3 [shape = 'u8[8192]{0}', space=vmem, size = 0x2000, scoped, tag = 'input window, operand 0']
    #allocation4 [shape = 's32[2]{0}', space=sflag, size = 0x8, scoped, tag = 'scoped memory for tpu_custom_call.1']
    #allocation5 [shape = 's32[2]{0}', space=sflag, size = 0x8, scoped, tag = 'scoped memory for tpu_custom_call.1']
    #allocation6 [shape = 'u8[1024]{0}', space=vmem, size = 0x400, scoped, tag = 'output window, operand 0']
    %12 = vsyncpa [#allocation4], 0
    %s13 = scalar_lea.sflag [#allocation4], 1
    %14 = vsyncpa %s13, 0
    %15 = vsyncpa [#allocation5], 0
    %s16 = scalar_lea.sflag [#allocation5], 1
    %17 = vsyncpa %s16, 0
    loop: start=0, step=1, limit=6
    $region2: #{tpu_custom_call.1} parent=1 // loop_pre_header
      _
    $region3: #{tpu_custom_call.1} parent=1 // loop_header
      %s19 = sphi 0, %s23
      %p20 = scmp.ge.s32.totalorder %s19, 6
      %s29 = sphi 0, %s31
      %s32 = sphi 0, %s29
      %s33 = sphi 0, %s32
      %s49 = sphi 0, %s33
      %s53 = sphi 0, %s53
      %s55 = sphi 0, %s53
      %s56 = sphi 0, %s55
      %s70 = sphi 0, %s56
      %s74 = sphi 0, %s74
      %s76 = sphi 0, %s74
      %s77 = sphi 0, %s76
      %s91 = sphi 0, %s77
      %s95 = sphi 0, %s95
      %s97 = sphi 0, %s95
      %s98 = sphi 0, %s97
      %s112 = sphi 0, %s98
      %s116 = sphi 0, %s116
      %s118 = sphi 0, %s116
      %s119 = sphi 0, %s118
      %s133 = sphi 0, %s119
      %s139 = sphi 0, %s141
      %s142 = sphi 0, %s139
      %s143 = sphi 0, %s142
      %s159 = sphi 0, %s143
    $region4: #{tpu_custom_call.1} parent=1 // loop_header_branch
      %22 = sbr.rel (%p20) target = $region8
    $region5: #{tpu_custom_call.1} parent=1 // loop_body
      %s24 = ssub.s32 %s19, 1
      %s25 = ssub.s32 %s19, 2
      %s26 = sadd.s32 %s19, 1
      %s27 = ssub.s32 %s19, %s26
      %p28 = scmp.eq.s32.totalorder %s27, 0
      %s30 = sadd.s32 %s29, 1
      %s31 = scalar_select %p28, %s29, %s30
      %p34 = pneg %p28
      %p35 = scmp.eq.s32.totalorder %s19, 3
      %p36 = por %p34, %p35
      %p37 = scmp.ne.s32.totalorder %s29, %s32
      %p38 = scmp.eq.s32.totalorder %s19, 0
      %p39 = por %p37, %p38
      %p40 = scmp.ne.s32.totalorder %s29, %s32
      %p41 = scmp.eq.s32.totalorder %s24, 3
      %p42 = por %p40, %p41
      %p43 = scmp.ne.s32.totalorder %s32, %s33
      %p44 = scmp.eq.s32.totalorder %s24, 0
      %p45 = por %p43, %p44
      %p46 = scmp.ne.s32.totalorder %s32, %s33
      %p47 = scmp.eq.s32.totalorder %s25, 3
      %p48 = por %p46, %p47
      %p50 = scmp.ne.s32.totalorder %s33, %s49
      %p51 = scmp.eq.s32.totalorder %s25, 0
      %p52 = por %p50, %p51
      %s54 = sadd.s32 %s53, 1
      %p57 = scmp.eq.s32.totalorder %s19, 3
      %p58 = scmp.ne.s32.totalorder %s53, %s55
      %p59 = scmp.eq.s32.totalorder %s19, 0
      %p60 = por %p58, %p59
      %p61 = scmp.ne.s32.totalorder %s53, %s55
      %p62 = scmp.eq.s32.totalorder %s24, 3
      %p63 = por %p61, %p62
      %p64 = scmp.ne.s32.totalorder %s55, %s56
      %p65 = scmp.eq.s32.totalorder %s24, 0
      %p66 = por %p64, %p65
      %p67 = scmp.ne.s32.totalorder %s55, %s56
      %p68 = scmp.eq.s32.totalorder %s25, 3
      %p69 = por %p67, %p68
      %p71 = scmp.ne.s32.totalorder %s56, %s70
      %p72 = scmp.eq.s32.totalorder %s25, 0
      %p73 = por %p71, %p72
      %s75 = sadd.s32 %s74, 1
      %p78 = scmp.eq.s32.totalorder %s19, 3
      %p79 = scmp.ne.s32.totalorder %s74, %s76
      %p80 = scmp.eq.s32.totalorder %s19, 0
      %p81 = por %p79, %p80
      %p82 = scmp.ne.s32.totalorder %s74, %s76
      %p83 = scmp.eq.s32.totalorder %s24, 3
      %p84 = por %p82, %p83
      %p85 = scmp.ne.s32.totalorder %s76, %s77
      %p86 = scmp.eq.s32.totalorder %s24, 0
      %p87 = por %p85, %p86
      %p88 = scmp.ne.s32.totalorder %s76, %s77
      %p89 = scmp.eq.s32.totalorder %s25, 3
      %p90 = por %p88, %p89
      %p92 = scmp.ne.s32.totalorder %s77, %s91
      %p93 = scmp.eq.s32.totalorder %s25, 0
      %p94 = por %p92, %p93
      %s96 = sadd.s32 %s95, 1
      %p99 = scmp.eq.s32.totalorder %s19, 3
      %p100 = scmp.ne.s32.totalorder %s95, %s97
      %p101 = scmp.eq.s32.totalorder %s19, 0
      %p102 = por %p100, %p101
      %p103 = scmp.ne.s32.totalorder %s95, %s97
      %p104 = scmp.eq.s32.totalorder %s24, 3
      %p105 = por %p103, %p104
      %p106 = scmp.ne.s32.totalorder %s97, %s98
      %p107 = scmp.eq.s32.totalorder %s24, 0
      %p108 = por %p106, %p107
      %p109 = scmp.ne.s32.totalorder %s97, %s98
      %p110 = scmp.eq.s32.totalorder %s25, 3
      %p111 = por %p109, %p110
      %p113 = scmp.ne.s32.totalorder %s98, %s112
      %p114 = scmp.eq.s32.totalorder %s25, 0
      %p115 = por %p113, %p114
      %s117 = sadd.s32 %s116, 1
      %p120 = scmp.eq.s32.totalorder %s19, 3
      %p121 = scmp.ne.s32.totalorder %s116, %s118
      %p122 = scmp.eq.s32.totalorder %s19, 0
      %p123 = por %p121, %p122
      %p124 = scmp.ne.s32.totalorder %s116, %s118
      %p125 = scmp.eq.s32.totalorder %s24, 3
      %p126 = por %p124, %p125
      %p127 = scmp.ne.s32.totalorder %s118, %s119
      %p128 = scmp.eq.s32.totalorder %s24, 0
      %p129 = por %p127, %p128
      %p130 = scmp.ne.s32.totalorder %s118, %s119
      %p131 = scmp.eq.s32.totalorder %s25, 3
      %p132 = por %p130, %p131
      %p134 = scmp.ne.s32.totalorder %s119, %s133
      %p135 = scmp.eq.s32.totalorder %s25, 0
      %p136 = por %p134, %p135
      %s137 = ssub.s32 %s19, %s26
      %p138 = scmp.eq.s32.totalorder %s137, 0
      %s140 = sadd.s32 %s139, 1
      %s141 = scalar_select %p138, %s139, %s140
      %p144 = pneg %p138
      %p145 = scmp.eq.s32.totalorder %s19, 3
      %p146 = por %p144, %p145
      %p147 = scmp.ne.s32.totalorder %s139, %s142
      %p148 = scmp.eq.s32.totalorder %s19, 0
      %p149 = por %p147, %p148
      %p150 = scmp.ne.s32.totalorder %s139, %s142
      %p151 = scmp.eq.s32.totalorder %s24, 3
      %p152 = por %p150, %p151
      %p153 = scmp.ne.s32.totalorder %s142, %s143
      %p154 = scmp.eq.s32.totalorder %s24, 0
      %p155 = por %p153, %p154
      %p156 = scmp.ne.s32.totalorder %s142, %s143
      %p157 = scmp.eq.s32.totalorder %s25, 3
      %p158 = por %p156, %p157
      %p160 = scmp.ne.s32.totalorder %s143, %s159
      %p161 = scmp.eq.s32.totalorder %s25, 0
      %p162 = por %p160, %p161
      %p163 = scmp.le.s32.totalorder 1, %s19
      %p164 = scmp.lt.s32.totalorder %s19, 5
      %p165 = pnand %p163, %p164
      %p166 = pneg %p165
      // Predicated region
      $region9: #{tpu_custom_call.1} parent=5 // pred_check
        _
      $region10: #{tpu_custom_call.1} parent=5 // pred_check_branch
        %168 = sbr.rel (%p165) target = $region12
      $region11: #{tpu_custom_call.1} parent=5 // pred_region
        %s169 = ssub.s32 %s19, 1
        // Predicated region
        $region13: #{tpu_custom_call.1} parent=11 // pred_check
          %p170 = pneg %p66
        $region14: #{tpu_custom_call.1} parent=11 // pred_check_branch
          %172 = sbr.rel (%p170) target = $region16
        $region15: #{tpu_custom_call.1} parent=11 // pred_region
          _
        $region16: #{tpu_custom_call.1} parent=11 // pred_fallthru
          _
        // Predicated region
        $region17: #{tpu_custom_call.1} parent=11 // pred_check
          %p173 = pneg %p87
        $region18: #{tpu_custom_call.1} parent=11 // pred_check_branch
          %175 = sbr.rel (%p173) target = $region20
        $region19: #{tpu_custom_call.1} parent=11 // pred_region
          _
        $region20: #{tpu_custom_call.1} parent=11 // pred_fallthru
          _
        // Predicated region
        $region21: #{tpu_custom_call.1} parent=11 // pred_check
          %p176 = pneg %p108
        $region22: #{tpu_custom_call.1} parent=11 // pred_check_branch
          %178 = sbr.rel (%p176) target = $region24
        $region23: #{tpu_custom_call.1} parent=11 // pred_region
          _
        $region24: #{tpu_custom_call.1} parent=11 // pred_fallthru
          _
        // Predicated region
        $region25: #{tpu_custom_call.1} parent=11 // pred_check
          %p179 = pneg %p129
        $region26: #{tpu_custom_call.1} parent=11 // pred_check_branch
          %181 = sbr.rel (%p179) target = $region28
        $region27: #{tpu_custom_call.1} parent=11 // pred_region
          _
        $region28: #{tpu_custom_call.1} parent=11 // pred_fallthru
          _
      $region12: #{tpu_custom_call.1} parent=5 // pred_fallthru
        _
      %p182 = scmp.lt.s32.totalorder %s19, 4
      // Predicated region
      $region29: #{tpu_custom_call.1} parent=5 // pred_check
        %p183 = pneg %p182
      $region30: #{tpu_custom_call.1} parent=5 // pred_check_branch
        %185 = sbr.rel (%p183) target = $region32
      $region31: #{tpu_custom_call.1} parent=5 // pred_region
        // Predicated region
        $region33: #{tpu_custom_call.1} parent=31 // pred_check
          %p186 = pneg %p39
        $region34: #{tpu_custom_call.1} parent=31 // pred_check_branch
          %188 = sbr.rel (%p186) target = $region36
        $region35: #{tpu_custom_call.1} parent=31 // pred_region
          %s189 = sand.u32 %s29, 1
          %s190 = scalar_lea.sflag [#allocation4], %s189
          %s191 = sand.u32 %s29, 1
          %s192 = smul.addr %s191, 8
          %s193 = scalar_lea.vmem [#allocation3], %s192
          %s195 = ssub.s32 128, 128
          %196 = vsyncadd %s190, %s195
          %s197 = smul.addr %s19, 128
          %s198 = scalar_lea.hbm %s0, %s197
          %s200 = sshll.u32 %s193, 4
          %s201 = int_to_ptr.vmem [resolvable:$true] %s200
          %203 = dma.hbm_to_vmem [thread:$0]  %s198, 128, %s201, %s190
        $region36: #{tpu_custom_call.1} parent=31 // pred_fallthru
          _
      $region32: #{tpu_custom_call.1} parent=5 // pred_fallthru
        _
      %p204 = scmp.le.s32.totalorder 1, %s19
      %p205 = scmp.lt.s32.totalorder %s19, 5
      %p206 = pnand %p204, %p205
      %p207 = pneg %p206
      // Predicated region
      $region37: #{tpu_custom_call.1} parent=5 // pred_check
        _
      $region38: #{tpu_custom_call.1} parent=5 // pred_check_branch
        %209 = sbr.rel (%p206) target = $region40
      $region39: #{tpu_custom_call.1} parent=5 // pred_region
        %s210 = ssub.s32 %s19, 1
        %s211 = sand.u32 %s32, 1
        %s212 = scalar_lea.sflag [#allocation4], %s211
        %s213 = sand.u32 %s32, 1
        %s214 = smul.addr %s213, 8
        %s215 = scalar_lea.vmem [#allocation3], %s214
        // Predicated region
        $region41: #{tpu_custom_call.1} parent=39 // pred_check
          %p216 = pneg %p45
        $region42: #{tpu_custom_call.1} parent=39 // pred_check_branch
          %218 = sbr.rel (%p216) target = $region44
        $region43: #{tpu_custom_call.1} parent=39 // pred_region
          %219 = dma.done %s212, 128
        $region44: #{tpu_custom_call.1} parent=39 // pred_fallthru
          _
        %s220 = sand.u32 %s32, 1
        %s221 = scalar_lea.sflag [#allocation4], %s220
        %s222 = sand.u32 %s32, 1
        %s223 = smul.addr %s222, 8
        %s224 = scalar_lea.vmem [#allocation3], %s223
        %p225 = pneg %p45
        %p226 = pneg %p42
        %p227 = pneg %p66
        %p228 = pneg %p63
        %p229 = pneg %p87
        %p230 = pneg %p84
        %p231 = pneg %p108
        %p232 = pneg %p105
        %p233 = pneg %p129
        %p234 = pneg %p126
        %p235 = pneg %p155
        %p236 = pneg %p152
        %s237 = sand.u32 %s142, 1
        %s238 = scalar_lea.sflag [#allocation5], %s237
        %s239 = sand.u32 %s142, 1
        %s240 = scalar_lea.vmem [#allocation6], %s239
        %v241 = vld [vmem:[%s215] sm:$0x3f]
        %v242 = vld [vmem:[%s1] sm:$0x7]
        %v243 = vld [vmem:[%s2] sm:$0x7]
        %245 = vset.pattern.permute.xlu0 0
        %246 = vperm.xlu0 %245, %v243
        %v247 = vpop.permute.xlu0 %246
        %vm249 = vcmask 48128
        %v251 = vsel %vm249, %v242, 0
        %vm253 = vcmask 1045504
        %v255 = vsel %vm253, %v241, 0
        %257 = vmatprep.subr.mxu0 0.0
        %258 = vmatpush1.msra.mxu0 %v255
        %259 = vmatprep.subr.mxu0 0.0
        %260 = vmatpush1.msra.mxu0 0.0
        %261 = vmatprep.subr.mxu0 0.0
        %262 = vmatpush1.msra.mxu0 0.0
        %263 = vmatprep.subr.mxu0 0.0
        %264 = vmatpush1.msra.mxu0 0.0
        %265 = vmatprep.subr.mxu0 0.0
        %266 = vmatpush1.msra.mxu0 0.0
        %267 = vmatprep.subr.mxu0 0.0
        %268 = vmatpush1.msra.mxu0 0.0
        %269 = vmatprep.subr.mxu0 0.0
        %270 = vmatpush1.msra.mxu0 0.0
        %271 = vmatprep.subr.mxu0 0.0
        %272 = vmatpush1.msra.mxu0 0.0
        %273 = vmatprep.subr.mxu0 0.0
        %274 = vmatpush1.msra.mxu0 0.0
        %275 = vmatprep.subr.mxu0 0.0
        %276 = vmatpush1.msra.mxu0 0.0
        %277 = vmatprep.subr.mxu0 0.0
        %278 = vmatpush1.msra.mxu0 0.0
        %279 = vmatprep.subr.mxu0 0.0
        %280 = vmatpush1.msra.mxu0 0.0
        %281 = vmatprep.subr.mxu0 0.0
        %282 = vmatpush1.msra.mxu0 0.0
        %283 = vmatprep.subr.mxu0 0.0
        %284 = vmatpush1.msra.mxu0 0.0
        %285 = vmatprep.subr.mxu0 0.0
        %286 = vmatpush1.msra.mxu0 0.0
        %287 = vmatprep.subr.mxu0 0.0
        %288 = vmatpush1.msra.mxu0 0.0
        %289 = vmatprep.subr.mxu0 0.0
        %290 = vmatpush1.msra.mxu0 0.0
        %291 = vmatprep.subr.mxu0 0.0
        %292 = vmatpush1.msra.mxu0 0.0
        %293 = vmatprep.subr.mxu0 0.0
        %294 = vmatpush1.msra.mxu0 0.0
        %295 = vmatprep.subr.mxu0 0.0
        %296 = vmatpush1.msra.mxu0 0.0
        %297 = vmatprep.subr.mxu0 0.0
        %298 = vmatpush1.msra.mxu0 0.0
        %299 = vmatprep.subr.mxu0 0.0
        %300 = vmatpush1.msra.mxu0 0.0
        %301 = vmatprep.subr.mxu0 0.0
        %302 = vmatpush1.msra.mxu0 0.0
        %303 = vmatprep.subr.mxu0 0.0
        %304 = vmatpush1.msra.mxu0 0.0
        %305 = vmatprep.subr.mxu0 0.0
        %306 = vmatpush1.msra.mxu0 0.0
        %307 = vmatprep.subr.mxu0 0.0
        %308 = vmatpush1.msra.mxu0 0.0
        %309 = vmatprep.subr.mxu0 0.0
        %310 = vmatpush1.msra.mxu0 0.0
        %311 = vmatprep.subr.mxu0 0.0
        %312 = vmatpush1.msra.mxu0 0.0
        %313 = vmatprep.subr.mxu0 0.0
        %314 = vmatpush1.msra.mxu0 0.0
        %315 = vmatprep.subr.mxu0 0.0
        %316 = vmatpush1.msra.mxu0 0.0
        %317 = vmatprep.subr.mxu0 0.0
        %318 = vmatpush1.msra.mxu0 0.0
        %319 = vmatprep.subr.mxu0 0.0
        %320 = vmatpush1.msra.mxu0 0.0
        %321 = vmatprep.mubr.f32.mxu0 0.0
        %322 = vmatmul.mubr.f32.gmra.mrb[0].mxu0 %v251
        %v323 = vpop.f32.mrb[0].mxu0
        %v324 = vadd.f32 %v247, %v323
        %v325 = vpop.f32.mrb[0].mxu0
        %326 = vdwg.mxu0
        %v327 = vxor.u32 %v324, 2147483648
        %v328 = vmul.f32 %v327, 1.442695
        %v329 = vpow.pop %v328
        %v330 = vadd.f32 %v329, 1.0
        %v331 = vrcp.pop %v330
        %v332 = vmul.f32 1.0, %v331
        %v333 = vld [vmem:[%s3] sm:$0x7]
        %335 = vset.pattern.permute.xlu0 0
        %336 = vperm.xlu0 %335, %v333
        %v337 = vpop.permute.xlu0 %336
        %v339 = vmul.f32 %v332, %v337
        %vm340 = vcmask 1042432
        %v341 = vsel %vm340, %v339, 0.0
        %v342 = vrot.slane %v341, 4
        %v343 = vadd.f32 %v341, %v342
        %v344 = vrot.slane %v343, 2
        %v345 = vadd.f32 %v343, %v344
        %v346 = vrot.slane %v345, 1
        %v347 = vadd.f32 %v345, %v346
        %v348 = vld [vmem:[#allocation2] sm:$0x1]
        %350 = vset.pattern.permute.xlu0 0
        %351 = vperm.xlu0 %350, %v348
        %v352 = vpop.permute.xlu0 %351
        %v354 = vlaneseq
        %v355 = vshrl.u32 %v354, 7
        %v356 = vsub.s32 0, %v355
        %v357 = vrot.slane %v352, %v356
        %v358 = vadd.f32 %v347, %v357
        %359 = vst [vmem:[%s240] sm:$0x1] %v358
        %s360 = sand.u32 %s142, 1
        %s361 = scalar_lea.sflag [#allocation5], %s360
        %s362 = sand.u32 %s142, 1
        %s363 = scalar_lea.vmem [#allocation6], %s362
        // Predicated region
        $region45: #{tpu_custom_call.1} parent=39 // pred_check
          %p364 = pneg %p152
        $region46: #{tpu_custom_call.1} parent=39 // pred_check_branch
          %366 = sbr.rel (%p364) target = $region48
        $region47: #{tpu_custom_call.1} parent=39 // pred_region
          %s368 = ssub.s32 16, 16
          %369 = vsyncadd %s361, %s368
          %s370 = smul.addr %s24, 16
          %s371 = scalar_lea.hbm %s5, %s370
          %s373 = sshll.u32 %s363, 4
          %s374 = int_to_ptr.vmem [resolvable:$true] %s373
          %376 = dma.vmem_to_hbm [thread:$0]  %s374, 16, %s371, %s361
        $region48: #{tpu_custom_call.1} parent=39 // pred_fallthru
          _
      $region40: #{tpu_custom_call.1} parent=5 // pred_fallthru
        _
      %p377 = scmp.le.s32.totalorder 2, %s19
      // Predicated region
      $region49: #{tpu_custom_call.1} parent=5 // pred_check
        %p378 = pneg %p377
      $region50: #{tpu_custom_call.1} parent=5 // pred_check_branch
        %380 = sbr.rel (%p378) target = $region52
      $region51: #{tpu_custom_call.1} parent=5 // pred_region
        %s381 = ssub.s32 %s19, 2
        // Predicated region
        $region53: #{tpu_custom_call.1} parent=51 // pred_check
          %p382 = pneg %p158
        $region54: #{tpu_custom_call.1} parent=51 // pred_check_branch
          %384 = sbr.rel (%p382) target = $region56
        $region55: #{tpu_custom_call.1} parent=51 // pred_region
          %s385 = sand.u32 %s143, 1
          %s386 = scalar_lea.sflag [#allocation5], %s385
          %s387 = sand.u32 %s143, 1
          %s388 = scalar_lea.vmem [#allocation6], %s387
          %389 = dma.done %s386, 16
        $region56: #{tpu_custom_call.1} parent=51 // pred_fallthru
          _
      $region52: #{tpu_custom_call.1} parent=5 // pred_fallthru
        _
    $region6: #{tpu_custom_call.1} parent=1 // loop_footer
      %s23 = sadd.s32 1, %s19
    $region7: #{tpu_custom_call.1} parent=1 // loop_footer_branch
      %18 = sbr.rel target = $region3
    $region8: #{tpu_custom_call.1} parent=1 // loop_exit
      _
    %390 = vsyncpa [#allocation4], 1
    %s391 = scalar_lea.sflag [#allocation4], 1
    %392 = vsyncpa %s391, 1
    %393 = vsyncpa [#allocation5], 1
    %s394 = scalar_lea.sflag [#allocation5], 1
    %395 = vsyncpa %s394, 1

</llo_original>
